<compile_context>
chip_gen: v7x
topology: tpu7x:2x2x1
jax: 0.10.0
libtpu: 0.0.40
codegen_flags: <defaults>
</compile_context>

<pallas_src>
import functools

import jax
import jax.numpy as jnp
import numpy as np
from jax.experimental import pallas as pl
from jax.experimental.pallas import tpu as pltpu

LN_EPS = 1e-5  # PyTorch nn.LayerNorm default eps


def _round_up(x, m):
    return ((x + m - 1) // m) * m


# ----------------------------------------------------------------------------
# Tiling / VMEM budgeting (generation-aware)
# ----------------------------------------------------------------------------
def _choose_tiling(B, F_in, hidden, *, tb_target=4096):
    """Pick the batch tile so the double-buffered bf16 X block + resident
    weights + f32 intermediates fit a scoped-VMEM budget for the current TPU
    generation (v5e/v6e: 128 MiB physical, v7x: 64 MiB per TensorCore)."""
    try:
        vmem_cap = int(pltpu.get_tpu_info().vmem_capacity_bytes)
    except Exception:  # defensive: fall back to the smallest current chip
        vmem_cap = 64 * 1024 * 1024
    # Raise the scoped-VMEM limit (defaults: 16 MiB v5e / 32 MiB v6e,v7x) but
    # keep headroom below physical for compiler-internal scratch.
    vmem_limit = max(min(vmem_cap * 3 // 4, 100 * 1024 * 1024),
                     16 * 1024 * 1024)

    dims = [F_in] + list(hidden)
    weight_bytes = 0
    for fi, fo in zip(dims[:-1], dims[1:]):
        weight_bytes += fi * fo * 2 + 3 * fo * 4      # bf16 W + f32 b/g/be
    weight_bytes += 8 * hidden[-1] * 4 + 4            # wo8 + bo

    max_h = max(hidden)
    # Per batch-row footprint: 2x-buffered bf16 X block (+ an in-VMEM copy
    # feeding the MXU), 2x-buffered f32 output row, and a generous allowance
    # for f32 hidden activations / LayerNorm temporaries.
    per_row = 6 * F_in + 32 * max_h + 16
    usable = vmem_limit - weight_bytes - (4 << 20)
    tb_cap = max(256, (usable // per_row) // 256 * 256)

    # NOTE: whenever more than one grid step is needed (tb < B) the chosen tb
    # is a multiple of 256, which keeps the (1, tb) lane-dense output block
    # 128-aligned; for tiny batches a single full-array block is used.
    tb = min(tb_target, tb_cap, _round_up(B, 16))
    Bp = _round_up(B, tb)
    return tb, Bp, int(vmem_limit)


# ----------------------------------------------------------------------------
# Pallas kernel: fc/LN/ReLU stack + output Linear + sigmoid
# ----------------------------------------------------------------------------
def _ln_relu(h, g, be):
    # Two-pass LayerNorm statistics (avoids E[x^2]-E[x]^2 cancellation).
    mu = jnp.mean(h, axis=-1, keepdims=True)
    c = h - mu
    var = jnp.mean(c * c, axis=-1, keepdims=True)
    hn = c * jax.lax.rsqrt(var + LN_EPS)
    return jnp.maximum(hn * g + be, 0.0)


def _make_mlp_kernel(num_hidden):
    """Kernel over one batch tile.

    Ref order: x, (w, b, g, be) for each hidden layer, wo8 (8, h_last),
               bo (1, 1), out (1, tb).
    """

    def kernel(*refs):
        it = iter(refs)
        x_ref = next(it)                                     # (tb, F_in) bf16
        h = None
        for l in range(num_hidden):
            w = next(it)[...]                                # bf16
            b = next(it)[...]                                # (1, h) f32
            g = next(it)[...]
            be = next(it)[...]
            a = x_ref[...] if l == 0 else h.astype(w.dtype)
            h = jnp.dot(a, w, preferred_element_type=jnp.float32) + b
            h = _ln_relu(h, g, be)                           # f32 (tb, h)

        wo8 = next(it)[...]                                  # (8, h_last) f32
        bo = next(it)[...]                                   # (1, 1) f32
        out_ref = next(it)                                   # (1, tb) f32

        # Lane-dense output row: flash-attention-style NT dot on the MXU,
        # (8, Hl) x (tb, Hl) contracting the last dims -> (8, tb).  Only row 0
        # of wo8 is real (rows 1..7 are zero padding to fill the sublane
        # granule); slice it out and store one unmasked (1, tb) row per step.
        logits = jax.lax.dot_general(
            wo8, h, dimension_numbers=(((1,), (1,)), ((), ())),
            preferred_element_type=jnp.float32)
        out_ref[...] = jax.nn.sigmoid(logits[0:1, :] + bo)

    return kernel


def mlp_pallas(X, params, cfg, *, tb, vmem_limit_bytes):
    """Run the PIN fc tower (fc/LN/ReLU xN + output/sigmoid) as one Pallas call.

    X: (Bp, F_in) bf16, batch already padded to a multiple of tb.
    Returns a (1, Bp) f32 row of sigmoid outputs.
    """
    Bp, F_in = X.shape
    hidden = cfg["hidden_dims"]
    num_hidden = len(hidden)
    assert Bp % tb == 0
    act_dt = X.dtype

    args = [X]
    for l in range(num_hidden):
        args += [params["fc_w"][l].astype(act_dt),
                 params["fc_b"][l], params["ln_g"][l], params["ln_be"][l]]
    h_last = hidden[-1]
    wo8 = jnp.zeros((8, h_last), jnp.float32).at[0].set(params["wo"][:, 0])
    args += [wo8, params["bo"].reshape(1, 1)]

    # Stream batch tiles of the activation slab; all parameters use constant
    # index_maps so they stay VMEM-resident across grid steps (no re-DMA).
    x_spec = pl.BlockSpec((tb, F_in), lambda i: (i, 0))

    def const_spec(a):
        nd = a.ndim
        return pl.BlockSpec(a.shape, lambda i, _nd=nd: (0,) * _nd)

    in_specs = [x_spec] + [const_spec(a) for a in args[1:]]

    out = pl.pallas_call(
        _make_mlp_kernel(num_hidden),
        out_shape=jax.ShapeDtypeStruct((1, Bp), jnp.float32),
        grid=(Bp // tb,),
        in_specs=in_specs,
        out_specs=pl.BlockSpec((1, tb), lambda i: (0, i)),
        compiler_params=pltpu.CompilerParams(
            dimension_semantics=("parallel",),
            vmem_limit_bytes=vmem_limit_bytes),
    )(*args)
    return out


# ----------------------------------------------------------------------------
# Glue: embedding lookups, pairwise interactions, per-field subnet (JAX/XLA)
# ----------------------------------------------------------------------------
def build_features(conts, cates, params, cfg, out_dtype=jnp.bfloat16):
    """Builds torch's X = cat(flat embeddings, flat subnet output), emitted
    directly in `out_dtype` (the cast is fused into the concat write)."""
    B = conts.shape[0]
    tbl = params["cate_emb"]                                   # (n_feat, D)

    cont_idx = jnp.arange(cfg["cont_field"], dtype=jnp.int32)
    cont_emb = tbl[cont_idx][None, :, :] * conts[:, :, None]   # (B, cont, D)
    cate_emb = tbl[cates]                                      # (B, cate, D)
    cc = jnp.concatenate([cont_emb, cate_emb], axis=1)         # (B, F, D)

    rows, cols = cfg["rows"], cfg["cols"]                      # static numpy
    p = cc[:, rows, :]                                         # (B, comb, D)
    q = cc[:, cols, :]
    z = jnp.concatenate([p, q, p * q], axis=2)                 # (B, comb, 3D)

    # TODO(synk): fold this per-pair-field subnet into the Pallas pipeline as
    # a block-diagonal matmul + segmented-LN stage so z never round-trips HBM;
    # left to XLA's batched dot here to keep the kernel lowering risk-free.
    for idx in range(len(cfg["subnet"])):
        w = params["sub_w"][idx]                               # (comb, in, out)
        b = params["sub_b"][idx]                               # (comb, 1, out)
        g = params["sub_g"][idx]
        be = params["sub_be"][idx]
        z = jnp.einsum("bfi,fio->bfo", z, w) + b[:, 0, :][None]
        mu = z.mean(-1, keepdims=True)
        var = ((z - mu) ** 2).mean(-1, keepdims=True)
        z = (z - mu) * jax.lax.rsqrt(var + LN_EPS) * g + be
        z = jnp.maximum(z, 0.0)

    X = jnp.concatenate([cc.reshape(B, -1).astype(out_dtype),
                         z.reshape(B, -1).astype(out_dtype)], axis=1)
    return X


def pin_forward(conts, cates, combs, params, cfg):
    del combs  # the torch forward takes `combs` but never uses it
    B = conts.shape[0]
    F_in = ((cfg["cont_field"] + cfg["cate_field"]) * cfg["orig_dim"]
            + cfg["comb_field"] * cfg["subnet"][-1])
    tb, Bp, vmem_limit = _choose_tiling(B, F_in, cfg["hidden_dims"])

    # Pad the *tiny* raw inputs (not the big feature matrix) so the whole
    # feature build runs at the padded batch and no full-X pad copy is needed.
    if Bp != B:
        conts = jnp.pad(conts, ((0, Bp - B), (0, 0)))
        cates = jnp.pad(cates, ((0, Bp - B), (0, 0)))

    X = build_features(conts, cates, params, cfg, out_dtype=jnp.bfloat16)
    out_row = mlp_pallas(X, params, cfg, tb=tb, vmem_limit_bytes=vmem_limit)
    return out_row[0, :B].reshape(B, 1)


# Pure-JAX f32 reference (same math, no Pallas) used only to sanity-check.
def pin_reference(conts, cates, combs, params, cfg):
    del combs
    h = build_features(conts, cates, params, cfg, out_dtype=jnp.float32)
    for l in range(len(cfg["hidden_dims"])):
        h = h @ params["fc_w"][l] + params["fc_b"][l]
        mu = h.mean(-1, keepdims=True)
        var = ((h - mu) ** 2).mean(-1, keepdims=True)
        h = (h - mu) / jnp.sqrt(var + LN_EPS) * params["ln_g"][l] + params["ln_be"][l]
        h = jnp.maximum(h, 0.0)
    return jax.nn.sigmoid(h @ params["wo"] + params["bo"])


# ----------------------------------------------------------------------------
# Deterministic parameter construction (mirrors the module __init__ shapes)
# ----------------------------------------------------------------------------
def init_params(key, cfg):
    D = cfg["orig_dim"]
    F = cfg["cont_field"] + cfg["cate_field"]
    comb_field = cfg["comb_field"]
    subnet = cfg["subnet"]
    hidden = cfg["hidden_dims"]
    F0 = comb_field * subnet[-1] + F * D

    keys = iter(jax.random.split(key, 64))

    def xavier(shape):
        fi, fo = shape[-2], shape[-1]
        bound = float(np.sqrt(6.0 / (fi + fo)))
        return jax.random.uniform(next(keys), shape, jnp.float32, -bound, bound)

    a_emb = float(np.square(3.0 / (cfg["cate_field"] * D)))
    params = {
        "cate_emb": jax.random.uniform(next(keys), (cfg["cate_cont_feature"], D),
                                       jnp.float32, -a_emb, a_emb),
        "sub_w": [], "sub_b": [], "sub_g": [], "sub_be": [],
        "fc_w": [], "fc_b": [], "ln_g": [], "ln_be": [],
    }

    lin = D * 3
    for lout in subnet:
        params["sub_w"].append(xavier((comb_field, lin, lout)))
        params["sub_b"].append(xavier((comb_field, 1, lout)))
        params["sub_g"].append(jnp.ones((lout,), jnp.float32))
        params["sub_be"].append(jnp.zeros((lout,), jnp.float32))
        lin = lout

    dims = [F0] + list(hidden)
    for fi, fo in zip(dims[:-1], dims[1:]):
        params["fc_w"].append(xavier((fi, fo)))
        bb = float(1.0 / np.sqrt(fi))
        params["fc_b"].append(jax.random.uniform(next(keys), (1, fo),
                                                 jnp.float32, -bb, bb))
        params["ln_g"].append(jnp.ones((1, fo), jnp.float32))
        params["ln_be"].append(jnp.zeros((1, fo), jnp.float32))

    params["wo"] = xavier((hidden[-1], 1))
    bo_b = float(1.0 / np.sqrt(hidden[-1]))
    params["bo"] = jax.random.uniform(next(keys), (1, 1), jnp.float32, -bo_b, bo_b)
    return params


if __name__ == "__main__":
    # Small config consistent with the module defaults (same structure,
    # reduced dims): cont_cate_field = 6 -> comb_field = 15 pairs.
    cont_field, cate_field = 2, 4
    F = cont_field + cate_field
    rows, cols = [], []
    for i in range(F):
        for j in range(i + 1, F):
            rows.append(i)
            cols.append(j)

    cfg = dict(
        cont_field=cont_field,
        cate_field=cate_field,
        cate_cont_feature=20,
        orig_dim=8,
        subnet=[16, 4],
        hidden_dims=[32, 32],
        comb_field=len(rows),
        rows=np.asarray(rows, np.int32),
        cols=np.asarray(cols, np.int32),
    )

    key = jax.random.PRNGKey(0)
    kp, k1, k2, k3 = jax.random.split(key, 4)
    params = init_params(kp, cfg)

    B = 8
    conts = jax.random.normal(k1, (B, cont_field), jnp.float32)
    cates = jax.random.randint(k2, (B, cate_field), 0, cfg["cate_cont_feature"])
    combs = jax.random.randint(k3, (B, cfg["comb_field"]), 0, 30)  # unused, as in torch

    fwd = jax.jit(functools.partial(pin_forward, cfg=cfg))
    out = jax.block_until_ready(fwd(conts, cates, combs, params))

    ref = pin_reference(conts, cates, combs, params, cfg)
    assert out.shape == (B, 1)
    # bf16 activations/weights inside the kernel (f32 accumulation) -> looser
    # tolerance than a pure-f32 comparison.
    np.testing.assert_allclose(np.asarray(out), np.asarray(ref), rtol=2e-2, atol=2e-2)

    print("KERNEL_OK")
</pallas_src>

<mosaic_0001>
module attributes {stable_mosaic.version = 11 : i64} {
  func.func @kernel(%arg0: i32, %arg1: memref<16x108xbf16, #tpu.memory_space<vmem>>, %arg2: memref<108x32xbf16, #tpu.memory_space<vmem>>, %arg3: memref<1x32xf32, #tpu.memory_space<vmem>>, %arg4: memref<1x32xf32, #tpu.memory_space<vmem>>, %arg5: memref<1x32xf32, #tpu.memory_space<vmem>>, %arg6: memref<32x32xbf16, #tpu.memory_space<vmem>>, %arg7: memref<1x32xf32, #tpu.memory_space<vmem>>, %arg8: memref<1x32xf32, #tpu.memory_space<vmem>>, %arg9: memref<1x32xf32, #tpu.memory_space<vmem>>, %arg10: memref<8x32xf32, #tpu.memory_space<vmem>>, %arg11: memref<1x1xf32, #tpu.memory_space<vmem>>, %arg12: memref<1x16xf32, #tpu.memory_space<vmem>>) attributes {dimension_semantics = [#tpu.dimension_semantics<parallel>], iteration_bounds = array<i64: 1>, scalar_prefetch = 0 : i64, scratch_operands = 0 : i64, tpu.core_type = #tpu.core_type<tc>, window_params = [{transform_indices = @transform_0, window_bounds = array<i64: 16, 108>}, {pipeline_mode = #tpu.pipeline_mode<synchronous>, transform_indices = @transform_1, window_bounds = array<i64: 108, 32>}, {pipeline_mode = #tpu.pipeline_mode<synchronous>, transform_indices = @transform_2, window_bounds = array<i64: 1, 32>}, {pipeline_mode = #tpu.pipeline_mode<synchronous>, transform_indices = @transform_3, window_bounds = array<i64: 1, 32>}, {pipeline_mode = #tpu.pipeline_mode<synchronous>, transform_indices = @transform_4, window_bounds = array<i64: 1, 32>}, {pipeline_mode = #tpu.pipeline_mode<synchronous>, transform_indices = @transform_5, window_bounds = array<i64: 32, 32>}, {pipeline_mode = #tpu.pipeline_mode<synchronous>, transform_indices = @transform_6, window_bounds = array<i64: 1, 32>}, {pipeline_mode = #tpu.pipeline_mode<synchronous>, transform_indices = @transform_7, window_bounds = array<i64: 1, 32>}, {pipeline_mode = #tpu.pipeline_mode<synchronous>, transform_indices = @transform_8, window_bounds = array<i64: 1, 32>}, {pipeline_mode = #tpu.pipeline_mode<synchronous>, transform_indices = @transform_9, window_bounds = array<i64: 8, 32>}, {pipeline_mode = #tpu.pipeline_mode<synchronous>, transform_indices = @transform_10, window_bounds = array<i64: 1, 1>}, {transform_indices = @transform_11, window_bounds = array<i64: 1, 16>}]} {
    %c0 = arith.constant 0 : index
    %c0_0 = arith.constant 0 : index
    %0 = vector.load %arg2[%c0, %c0_0] : memref<108x32xbf16, #tpu.memory_space<vmem>>, vector<108x32xbf16>
    %c0_1 = arith.constant 0 : index
    %c0_2 = arith.constant 0 : index
    %1 = vector.load %arg3[%c0_1, %c0_2] : memref<1x32xf32, #tpu.memory_space<vmem>>, vector<1x32xf32>
    %c0_3 = arith.constant 0 : index
    %c0_4 = arith.constant 0 : index
    %2 = vector.load %arg4[%c0_3, %c0_4] : memref<1x32xf32, #tpu.memory_space<vmem>>, vector<1x32xf32>
    %c0_5 = arith.constant 0 : index
    %c0_6 = arith.constant 0 : index
    %3 = vector.load %arg5[%c0_5, %c0_6] : memref<1x32xf32, #tpu.memory_space<vmem>>, vector<1x32xf32>
    %c0_7 = arith.constant 0 : index
    %c0_8 = arith.constant 0 : index
    %4 = vector.load %arg1[%c0_7, %c0_8] : memref<16x108xbf16, #tpu.memory_space<vmem>>, vector<16x108xbf16>
    %cst = arith.constant dense<0.000000e+00> : vector<16x32xf32>
    %5 = tpu.matmul %4, %0, %cst {dimension_numbers = #tpu.dot_dimension_numbers<[1], [0], [0], [1], [0, 0, 1, 1], [], []>} : vector<16x108xbf16>, vector<108x32xbf16>, vector<16x32xf32> -> vector<16x32xf32>
    %6 = vector.broadcast %1 : vector<1x32xf32> to vector<16x32xf32>
    %7 = arith.addf %5, %6 : vector<16x32xf32>
    %cst_9 = arith.constant dense<0.000000e+00> : vector<16xf32>
    %8 = vector.multi_reduction <add>, %7, %cst_9 [1] : vector<16x32xf32> to vector<16xf32>
    %9 = vector.shape_cast %8 : vector<16xf32> to vector<16x1xf32>
    %cst_10 = arith.constant 3.200000e+01 : f32
    %10 = vector.broadcast %cst_10 : f32 to vector<16x1xf32>
    %11 = arith.divf %9, %10 : vector<16x1xf32>
    %12 = vector.broadcast %11 : vector<16x1xf32> to vector<16x32xf32>
    %13 = arith.subf %7, %12 : vector<16x32xf32>
    %14 = arith.mulf %13, %13 : vector<16x32xf32>
    %cst_11 = arith.constant dense<0.000000e+00> : vector<16xf32>
    %15 = vector.multi_reduction <add>, %14, %cst_11 [1] : vector<16x32xf32> to vector<16xf32>
    %16 = vector.shape_cast %15 : vector<16xf32> to vector<16x1xf32>
    %cst_12 = arith.constant 3.200000e+01 : f32
    %17 = vector.broadcast %cst_12 : f32 to vector<16x1xf32>
    %18 = arith.divf %16, %17 : vector<16x1xf32>
    %cst_13 = arith.constant 9.99999974E-6 : f32
    %19 = vector.broadcast %cst_13 : f32 to vector<16x1xf32>
    %20 = arith.addf %18, %19 : vector<16x1xf32>
    %21 = math.rsqrt %20 : vector<16x1xf32>
    %22 = vector.broadcast %21 : vector<16x1xf32> to vector<16x32xf32>
    %23 = arith.mulf %13, %22 : vector<16x32xf32>
    %24 = vector.broadcast %2 : vector<1x32xf32> to vector<16x32xf32>
    %25 = arith.mulf %23, %24 : vector<16x32xf32>
    %26 = vector.broadcast %3 : vector<1x32xf32> to vector<16x32xf32>
    %27 = arith.addf %25, %26 : vector<16x32xf32>
    %cst_14 = arith.constant 0.000000e+00 : f32
    %28 = vector.broadcast %cst_14 : f32 to vector<16x32xf32>
    %29 = arith.maximumf %27, %28 : vector<16x32xf32>
    %c0_15 = arith.constant 0 : index
    %c0_16 = arith.constant 0 : index
    %30 = vector.load %arg6[%c0_15, %c0_16] : memref<32x32xbf16, #tpu.memory_space<vmem>>, vector<32x32xbf16>
    %c0_17 = arith.constant 0 : index
    %c0_18 = arith.constant 0 : index
    %31 = vector.load %arg7[%c0_17, %c0_18] : memref<1x32xf32, #tpu.memory_space<vmem>>, vector<1x32xf32>
    %c0_19 = arith.constant 0 : index
    %c0_20 = arith.constant 0 : index
    %32 = vector.load %arg8[%c0_19, %c0_20] : memref<1x32xf32, #tpu.memory_space<vmem>>, vector<1x32xf32>
    %c0_21 = arith.constant 0 : index
    %c0_22 = arith.constant 0 : index
    %33 = vector.load %arg9[%c0_21, %c0_22] : memref<1x32xf32, #tpu.memory_space<vmem>>, vector<1x32xf32>
    %34 = arith.truncf %29 : vector<16x32xf32> to vector<16x32xbf16>
    %cst_23 = arith.constant dense<0.000000e+00> : vector<16x32xf32>
    %35 = tpu.matmul %34, %30, %cst_23 {dimension_numbers = #tpu.dot_dimension_numbers<[1], [0], [0], [1], [0, 0, 1, 1], [], []>} : vector<16x32xbf16>, vector<32x32xbf16>, vector<16x32xf32> -> vector<16x32xf32>
    %36 = vector.broadcast %31 : vector<1x32xf32> to vector<16x32xf32>
    %37 = arith.addf %35, %36 : vector<16x32xf32>
    %cst_24 = arith.constant dense<0.000000e+00> : vector<16xf32>
    %38 = vector.multi_reduction <add>, %37, %cst_24 [1] : vector<16x32xf32> to vector<16xf32>
    %39 = vector.shape_cast %38 : vector<16xf32> to vector<16x1xf32>
    %cst_25 = arith.constant 3.200000e+01 : f32
    %40 = vector.broadcast %cst_25 : f32 to vector<16x1xf32>
    %41 = arith.divf %39, %40 : vector<16x1xf32>
    %42 = vector.broadcast %41 : vector<16x1xf32> to vector<16x32xf32>
    %43 = arith.subf %37, %42 : vector<16x32xf32>
    %44 = arith.mulf %43, %43 : vector<16x32xf32>
    %cst_26 = arith.constant dense<0.000000e+00> : vector<16xf32>
    %45 = vector.multi_reduction <add>, %44, %cst_26 [1] : vector<16x32xf32> to vector<16xf32>
    %46 = vector.shape_cast %45 : vector<16xf32> to vector<16x1xf32>
    %cst_27 = arith.constant 3.200000e+01 : f32
    %47 = vector.broadcast %cst_27 : f32 to vector<16x1xf32>
    %48 = arith.divf %46, %47 : vector<16x1xf32>
    %cst_28 = arith.constant 9.99999974E-6 : f32
    %49 = vector.broadcast %cst_28 : f32 to vector<16x1xf32>
    %50 = arith.addf %48, %49 : vector<16x1xf32>
    %51 = math.rsqrt %50 : vector<16x1xf32>
    %52 = vector.broadcast %51 : vector<16x1xf32> to vector<16x32xf32>
    %53 = arith.mulf %43, %52 : vector<16x32xf32>
    %54 = vector.broadcast %32 : vector<1x32xf32> to vector<16x32xf32>
    %55 = arith.mulf %53, %54 : vector<16x32xf32>
    %56 = vector.broadcast %33 : vector<1x32xf32> to vector<16x32xf32>
    %57 = arith.addf %55, %56 : vector<16x32xf32>
    %cst_29 = arith.constant 0.000000e+00 : f32
    %58 = vector.broadcast %cst_29 : f32 to vector<16x32xf32>
    %59 = arith.maximumf %57, %58 : vector<16x32xf32>
    %c0_30 = arith.constant 0 : index
    %c0_31 = arith.constant 0 : index
    %60 = vector.load %arg10[%c0_30, %c0_31] : memref<8x32xf32, #tpu.memory_space<vmem>>, vector<8x32xf32>
    %c0_32 = arith.constant 0 : index
    %c0_33 = arith.constant 0 : index
    %61 = vector.load %arg11[%c0_32, %c0_33] : memref<1x1xf32, #tpu.memory_space<vmem>>, vector<1x1xf32>
    %cst_34 = arith.constant dense<0.000000e+00> : vector<8x16xf32>
    %62 = tpu.matmul %60, %59, %cst_34 {dimension_numbers = #tpu.dot_dimension_numbers<[1], [1], [0], [0], [0, 0, 1, 0], [], []>} : vector<8x32xf32>, vector<16x32xf32>, vector<8x16xf32> -> vector<8x16xf32>
    %63 = vector.extract_strided_slice %62 {offsets = [0, 0], sizes = [1, 16], strides = [1, 1]} : vector<8x16xf32> to vector<1x16xf32>
    %64 = vector.broadcast %61 : vector<1x1xf32> to vector<1x16xf32>
    %65 = arith.addf %63, %64 : vector<1x16xf32>
    %66 = arith.negf %65 : vector<1x16xf32>
    %67 = math.exp %66 : vector<1x16xf32>
    %cst_35 = arith.constant 1.000000e+00 : f32
    %68 = vector.broadcast %cst_35 : f32 to vector<1x16xf32>
    %69 = arith.addf %68, %67 : vector<1x16xf32>
    %70 = arith.divf %68, %69 : vector<1x16xf32>
    %c0_36 = arith.constant 0 : index
    %c0_37 = arith.constant 0 : index
    %71 = vector.load %arg12[%c0_36, %c0_37] : memref<1x16xf32, #tpu.memory_space<vmem>>, vector<1x16xf32>
    tpu.vector_store %arg12[%c0_36, %c0_37], %70 {strides = array<i32>} : memref<1x16xf32, #tpu.memory_space<vmem>>, vector<1x16xf32>,
    return
  }
  func.func @transform_0(%arg0: i32) -> (i32, i32) {
    %c0_i32 = arith.constant 0 : i32
    %c0_i32_0 = arith.constant 0 : i32
    return %arg0, %c0_i32 : i32, i32
  }
  func.func @transform_1(%arg0: i32) -> (i32, i32) {
    %c0_i32 = arith.constant 0 : i32
    %c0_i32_0 = arith.constant 0 : i32
    %c0_i32_1 = arith.constant 0 : i32
    return %c0_i32, %c0_i32_0 : i32, i32
  }
  func.func @transform_2(%arg0: i32) -> (i32, i32) {
    %c0_i32 = arith.constant 0 : i32
    %c0_i32_0 = arith.constant 0 : i32
    %c0_i32_1 = arith.constant 0 : i32
    return %c0_i32, %c0_i32_0 : i32, i32
  }
  func.func @transform_3(%arg0: i32) -> (i32, i32) {
    %c0_i32 = arith.constant 0 : i32
    %c0_i32_0 = arith.constant 0 : i32
    %c0_i32_1 = arith.constant 0 : i32
    return %c0_i32, %c0_i32_0 : i32, i32
  }
  func.func @transform_4(%arg0: i32) -> (i32, i32) {
    %c0_i32 = arith.constant 0 : i32
    %c0_i32_0 = arith.constant 0 : i32
    %c0_i32_1 = arith.constant 0 : i32
    return %c0_i32, %c0_i32_0 : i32, i32
  }
  func.func @transform_5(%arg0: i32) -> (i32, i32) {
    %c0_i32 = arith.constant 0 : i32
    %c0_i32_0 = arith.constant 0 : i32
    %c0_i32_1 = arith.constant 0 : i32
    return %c0_i32, %c0_i32_0 : i32, i32
  }
  func.func @transform_6(%arg0: i32) -> (i32, i32) {
    %c0_i32 = arith.constant 0 : i32
    %c0_i32_0 = arith.constant 0 : i32
    %c0_i32_1 = arith.constant 0 : i32
    return %c0_i32, %c0_i32_0 : i32, i32
  }
  func.func @transform_7(%arg0: i32) -> (i32, i32) {
    %c0_i32 = arith.constant 0 : i32
    %c0_i32_0 = arith.constant 0 : i32
    %c0_i32_1 = arith.constant 0 : i32
    return %c0_i32, %c0_i32_0 : i32, i32
  }
  func.func @transform_8(%arg0: i32) -> (i32, i32) {
    %c0_i32 = arith.constant 0 : i32
    %c0_i32_0 = arith.constant 0 : i32
    %c0_i32_1 = arith.constant 0 : i32
    return %c0_i32, %c0_i32_0 : i32, i32
  }
  func.func @transform_9(%arg0: i32) -> (i32, i32) {
    %c0_i32 = arith.constant 0 : i32
    %c0_i32_0 = arith.constant 0 : i32
    %c0_i32_1 = arith.constant 0 : i32
    return %c0_i32, %c0_i32_0 : i32, i32
  }
  func.func @transform_10(%arg0: i32) -> (i32, i32) {
    %c0_i32 = arith.constant 0 : i32
    %c0_i32_0 = arith.constant 0 : i32
    %c0_i32_1 = arith.constant 0 : i32
    return %c0_i32, %c0_i32_0 : i32, i32
  }
  func.func @transform_11(%arg0: i32) -> (i32, i32) {
    %c0_i32 = arith.constant 0 : i32
    %c0_i32_0 = arith.constant 0 : i32
    return %c0_i32, %arg0 : i32, i32
  }
}

</mosaic_0001>

<llo_original>
// kernel: pin_forward.1
$region0: #{pin_forward.1}
  #allocation0 [shape = 'u32[]', space=smem, size = 0x4, offset = 0x4, fixed_abs, tag = 'smem constant byte address 0x4 - core index']
  #allocation1 [shape = 'u32[144,128]{1,0:T(1,128)}', space=vmem, size = 0x12000, scoped, tag = 'internal scratch']
  #allocation2 [shape = 'f32[1,1]{1,0:T(1,128)S(1)}', space=vmem, size = 0x200, scoped, tag = 'scoped memory for pin_forward.1']
  %s0 = inlined_call_operand.vmem [shape: bf16[16,108], index: 0, kind: input, shape index: {}]
  %s1 = inlined_call_operand.vmem [shape: bf16[108,32], index: 1, kind: input, shape index: {}]
  %s2 = inlined_call_operand.vmem [shape: f32[1,32], index: 2, kind: input, shape index: {}]
  %s3 = inlined_call_operand.vmem [shape: f32[1,32], index: 3, kind: input, shape index: {}]
  %s4 = inlined_call_operand.vmem [shape: f32[1,32], index: 4, kind: input, shape index: {}]
  %s5 = inlined_call_operand.vmem [shape: bf16[32,32], index: 5, kind: input, shape index: {}]
  %s6 = inlined_call_operand.vmem [shape: f32[1,32], index: 6, kind: input, shape index: {}]
  %s7 = inlined_call_operand.vmem [shape: f32[1,32], index: 7, kind: input, shape index: {}]
  %s8 = inlined_call_operand.vmem [shape: f32[1,32], index: 8, kind: input, shape index: {}]
  %s9 = inlined_call_operand.vmem [shape: f32[8,32], index: 9, kind: input, shape index: {}]
  %s10 = inlined_call_operand.<no memory space> [shape: f32[1,1], index: 10, kind: input, shape index: {}]
  %s11 = inlined_call_operand.vmem [shape: f32[1,16], index: 11, kind: output, shape index: {}]
  %s12 = sld [smem:[#allocation0]]
  $region54: #{pin_forward.1} parent=0
    _
  %s14 = ssub.s32 1, %s12
  %s15 = scalar_select 0, %s14, %s12
  %v16 = vstv %s10
  %17 = vst [vmem:[#allocation2] sm:$0x1] %v16
  // Predicated region
  $region2: #{pin_forward.1} parent=0 // pred_check
    _
  $region3: #{pin_forward.1} parent=0 // pred_check_branch
    %19 = sbr.rel (0) target = $region5
  $region4: #{pin_forward.1} parent=0 // pred_region
    _
  $region5: #{pin_forward.1} parent=0 // pred_fallthru
    _
  // Predicated region
  $region6: #{pin_forward.1} parent=0 // pred_check
    _
  $region7: #{pin_forward.1} parent=0 // pred_check_branch
    %21 = sbr.rel (0) target = $region9
  $region8: #{pin_forward.1} parent=0 // pred_region
    _
  $region9: #{pin_forward.1} parent=0 // pred_fallthru
    _
  // Predicated region
  $region10: #{pin_forward.1} parent=0 // pred_check
    _
  $region11: #{pin_forward.1} parent=0 // pred_check_branch
    %23 = sbr.rel (0) target = $region13
  $region12: #{pin_forward.1} parent=0 // pred_region
    _
  $region13: #{pin_forward.1} parent=0 // pred_fallthru
    _
  // Predicated region
  $region14: #{pin_forward.1} parent=0 // pred_check
    _
  $region15: #{pin_forward.1} parent=0 // pred_check_branch
    %25 = sbr.rel (0) target = $region17
  $region16: #{pin_forward.1} parent=0 // pred_region
    _
  $region17: #{pin_forward.1} parent=0 // pred_fallthru
    _
  // Predicated region
  $region18: #{pin_forward.1} parent=0 // pred_check
    _
  $region19: #{pin_forward.1} parent=0 // pred_check_branch
    %27 = sbr.rel (0) target = $region21
  $region20: #{pin_forward.1} parent=0 // pred_region
    _
  $region21: #{pin_forward.1} parent=0 // pred_fallthru
    _
  // Predicated region
  $region22: #{pin_forward.1} parent=0 // pred_check
    _
  $region23: #{pin_forward.1} parent=0 // pred_check_branch
    %29 = sbr.rel (0) target = $region25
  $region24: #{pin_forward.1} parent=0 // pred_region
    _
  $region25: #{pin_forward.1} parent=0 // pred_fallthru
    _
  // Predicated region
  $region26: #{pin_forward.1} parent=0 // pred_check
    _
  $region27: #{pin_forward.1} parent=0 // pred_check_branch
    %31 = sbr.rel (0) target = $region29
  $region28: #{pin_forward.1} parent=0 // pred_region
    _
  $region29: #{pin_forward.1} parent=0 // pred_fallthru
    _
  // Predicated region
  $region30: #{pin_forward.1} parent=0 // pred_check
    _
  $region31: #{pin_forward.1} parent=0 // pred_check_branch
    %33 = sbr.rel (0) target = $region33
  $region32: #{pin_forward.1} parent=0 // pred_region
    _
  $region33: #{pin_forward.1} parent=0 // pred_fallthru
    _
  // Predicated region
  $region34: #{pin_forward.1} parent=0 // pred_check
    _
  $region35: #{pin_forward.1} parent=0 // pred_check_branch
    %35 = sbr.rel (0) target = $region37
  $region36: #{pin_forward.1} parent=0 // pred_region
    _
  $region37: #{pin_forward.1} parent=0 // pred_fallthru
    _
  // Predicated region
  $region38: #{pin_forward.1} parent=0 // pred_check
    _
  $region39: #{pin_forward.1} parent=0 // pred_check_branch
    %37 = sbr.rel (0) target = $region41
  $region40: #{pin_forward.1} parent=0 // pred_region
    _
  $region41: #{pin_forward.1} parent=0 // pred_fallthru
    _
  // Predicated region
  $region42: #{pin_forward.1} parent=0 // pred_check
    _
  $region43: #{pin_forward.1} parent=0 // pred_check_branch
    %39 = sbr.rel (0) target = $region45
  $region44: #{pin_forward.1} parent=0 // pred_region
    _
  $region45: #{pin_forward.1} parent=0 // pred_fallthru
    _
  %v41 = vld [vmem:[%s1] sm:$0xf]
  %v42 = vld [vmem:[%s1 + $0x4] sm:$0xf]
  %v43 = vld [vmem:[%s1 + $0x8] sm:$0xf]
  %v44 = vld [vmem:[%s1 + $0xc] sm:$0xf]
  %v45 = vld [vmem:[%s1 + $0x10] sm:$0xf]
  %v46 = vld [vmem:[%s1 + $0x14] sm:$0xf]
  %v47 = vld [vmem:[%s1 + $0x18] sm:$0xf]
  %v48 = vld [vmem:[%s1 + $0x1c] sm:$0xf]
  %v49 = vld [vmem:[%s1 + $0x20] sm:$0xf]
  %v50 = vld [vmem:[%s1 + $0x24] sm:$0xf]
  %v51 = vld [vmem:[%s1 + $0x28] sm:$0xf]
  %v52 = vld [vmem:[%s1 + $0x2c] sm:$0xf]
  %v53 = vld [vmem:[%s1 + $0x30] sm:$0xf]
  %v54 = vld [vmem:[%s1 + $0x34] sm:$0x3]
  %v55 = vld [vmem:[%s2] sm:$0x1]
  %v56 = vld [vmem:[%s3] sm:$0x1]
  %v57 = vld [vmem:[%s4] sm:$0x1]
  %v58 = vld [vmem:[%s0] sm:$0xf]
  %v59 = vld [vmem:[%s0 + $0x4] sm:$0xf]
  %v61 = vlaneseq
  %v62 = vshrl.u32 %v61, 7
  %v63 = vsub.s32 0, %v62
  %v64 = vrot.slane %v55, %v63
  %v68 = vunpack.c.l.b16 %v58
  %v69 = vunpack.c.l.b16 %v59
  %v70 = vpack.c.b16 %v69, %v68
  %v85 = vunpack.c.l.b16 %v41
  %v86 = vunpack.c.l.b16 %v42
  %v87 = vunpack.c.l.b16 %v43
  %v88 = vunpack.c.l.b16 %v44
  %v89 = vunpack.c.l.b16 %v45
  %v90 = vunpack.c.l.b16 %v46
  %v91 = vunpack.c.l.b16 %v47
  %v92 = vunpack.c.l.b16 %v48
  %v93 = vunpack.c.l.b16 %v49
  %v94 = vunpack.c.l.b16 %v50
  %v95 = vunpack.c.l.b16 %v51
  %v96 = vunpack.c.l.b16 %v52
  %v97 = vunpack.c.l.b16 %v53
  %v98 = vunpack.c.l.b16 %v54
  %v99 = vpack.c.b16 %v86, %v85
  %v100 = vpack.c.b16 %v88, %v87
  %v101 = vpack.c.b16 %v90, %v89
  %v102 = vpack.c.b16 %v92, %v91
  %v103 = vpack.c.b16 %v94, %v93
  %v104 = vpack.c.b16 %v96, %v95
  %v105 = vpack.c.b16 %v98, %v97
  %vm112 = vcmask 883712
  %v114 = vsel %vm112, %v70, 0
  %vm116 = vcmask 1045504
  %v118 = vsel %vm116, %v105, 0
  %120 = vmatprep.subr.bf16.mxu0 0
  %121 = vmatpush1.bf16.msra.mxu0 %v99
  %122 = vmatprep.subr.bf16.mxu0 0
  %123 = vmatpush1.bf16.msra.mxu0 %v100
  %124 = vmatprep.subr.bf16.mxu0 0
  %125 = vmatpush1.bf16.msra.mxu0 %v101
  %126 = vmatprep.subr.bf16.mxu0 0
  %127 = vmatpush1.bf16.msra.mxu0 %v102
  %128 = vmatprep.subr.bf16.mxu0 0
  %129 = vmatpush1.bf16.msra.mxu0 %v103
  %130 = vmatprep.subr.bf16.mxu0 0
  %131 = vmatpush1.bf16.msra.mxu0 %v104
  %132 = vmatprep.subr.bf16.mxu0 0
  %133 = vmatpush1.bf16.msra.mxu0 %v118
  %134 = vmatprep.subr.bf16.mxu0 0
  %135 = vmatpush1.bf16.msra.mxu0 0
  %136 = vmatprep.subr.bf16.mxu0 0
  %137 = vmatpush1.bf16.msra.mxu0 0
  %138 = vmatprep.subr.bf16.mxu0 0
  %139 = vmatpush1.bf16.msra.mxu0 0
  %140 = vmatprep.subr.bf16.mxu0 0
  %141 = vmatpush1.bf16.msra.mxu0 0
  %142 = vmatprep.subr.bf16.mxu0 0
  %143 = vmatpush1.bf16.msra.mxu0 0
  %144 = vmatprep.subr.bf16.mxu0 0
  %145 = vmatpush1.bf16.msra.mxu0 0
  %146 = vmatprep.subr.bf16.mxu0 0
  %147 = vmatpush1.bf16.msra.mxu0 0
  %148 = vmatprep.subr.bf16.mxu0 0
  %149 = vmatpush1.bf16.msra.mxu0 0
  %150 = vmatprep.subr.bf16.mxu0 0
  %151 = vmatpush1.bf16.msra.mxu0 0
  %152 = vmatprep.mubr.bf16.mxu0 0
  %153 = vmatmul.mubr.bf16.gmra.mrb[0].mxu0 %v114
  %v154 = vpop.f32.mrb[0].mxu0
  %v155 = vadd.f32 %v64, %v154
  %v156 = vpop.f32.mrb[0].mxu0
  %v157 = vpop.f32.mrb[0].mxu0
  %v158 = vadd.f32 %v64, %v157
  %v159 = vpop.f32.mrb[0].mxu0
  %160 = vdwg.mxu0
  %vm161 = vcmask 261120
  %v162 = vsel %vm161, %v155, 0.0
  %163 = vadd.xlane.f32.xlu0 %v162
  %v164 = vpop.xlane.xlu0 %163
  %v165 = vsel %vm161, %v158, 0.0
  %166 = vadd.xlane.f32.xlu0 %v165
  %v167 = vpop.xlane.xlu0 %166
  %v168 = vrcp.pop 32.0
  %v169 = vmul.f32 %v164, %v168
  %v170 = vmul.f32 %v167, %v168
  %v171 = vsub.f32 %v155, %v169
  %v172 = vsub.f32 %v158, %v170
  %v173 = vmul.f32 %v171, %v171
  %v174 = vmul.f32 %v172, %v172
  %v175 = vsel %vm161, %v173, 0.0
  %176 = vadd.xlane.f32.xlu0 %v175
  %v177 = vpop.xlane.xlu0 %176
  %v178 = vsel %vm161, %v174, 0.0
  %179 = vadd.xlane.f32.xlu0 %v178
  %v180 = vpop.xlane.xlu0 %179
  %v181 = vmul.f32 %v177, %v168
  %v182 = vmul.f32 %v180, %v168
  %v183 = vadd.f32 %v181, 1e-05
  %v184 = vadd.f32 %v182, 1e-05
  %v185 = vrsqrt.pop %v183
  %v186 = vrsqrt.pop %v184
  %v187 = vmul.f32 %v171, %v185
  %v188 = vmul.f32 %v172, %v186
  %v190 = vlaneseq
  %v191 = vshrl.u32 %v190, 7
  %v192 = vsub.s32 0, %v191
  %v193 = vrot.slane %v56, %v192
  %v195 = vmul.f32 %v187, %v193
  %v196 = vmul.f32 %v188, %v193
  %v198 = vlaneseq
  %v199 = vshrl.u32 %v198, 7
  %v200 = vsub.s32 0, %v199
  %v201 = vrot.slane %v57, %v200
  %v203 = vadd.f32 %v195, %v201
  %v204 = vadd.f32 %v196, %v201
  %v205 = vmax.f32 %v203, 0.0
  %v206 = vmax.f32 %v204, 0.0
  %v207 = vld [vmem:[%s5] sm:$0xf]
  %v208 = vld [vmem:[%s5 + $0x4] sm:$0xf]
  %v209 = vld [vmem:[%s5 + $0x8] sm:$0xf]
  %v210 = vld [vmem:[%s5 + $0xc] sm:$0xf]
  %v211 = vld [vmem:[%s6] sm:$0x1]
  %v212 = vld [vmem:[%s7] sm:$0x1]
  %v213 = vld [vmem:[%s8] sm:$0x1]
  %v214 = vpack.c.bf16 %v206, %v205
  %v216 = vlaneseq
  %v217 = vshrl.u32 %v216, 7
  %v218 = vsub.s32 0, %v217
  %v219 = vrot.slane %v211, %v218
  %v225 = vunpack.c.l.b16 %v207
  %v226 = vunpack.c.l.b16 %v208
  %v227 = vunpack.c.l.b16 %v209
  %v228 = vunpack.c.l.b16 %v210
  %v229 = vpack.c.b16 %v226, %v225
  %v230 = vpack.c.b16 %v228, %v227
  %v234 = vsel %vm161, %v214, 0
  %236 = vmatprep.subr.bf16.mxu0 0
  %237 = vmatpush1.bf16.msra.mxu0 %v229
  %238 = vmatprep.subr.bf16.mxu0 0
  %239 = vmatpush1.bf16.msra.mxu0 %v230
  %240 = vmatprep.subr.bf16.mxu0 0
  %241 = vmatpush1.bf16.msra.mxu0 0
  %242 = vmatprep.subr.bf16.mxu0 0
  %243 = vmatpush1.bf16.msra.mxu0 0
  %244 = vmatprep.subr.bf16.mxu0 0
  %245 = vmatpush1.bf16.msra.mxu0 0
  %246 = vmatprep.subr.bf16.mxu0 0
  %247 = vmatpush1.bf16.msra.mxu0 0
  %248 = vmatprep.subr.bf16.mxu0 0
  %249 = vmatpush1.bf16.msra.mxu0 0
  %250 = vmatprep.subr.bf16.mxu0 0
  %251 = vmatpush1.bf16.msra.mxu0 0
  %252 = vmatprep.subr.bf16.mxu0 0
  %253 = vmatpush1.bf16.msra.mxu0 0
  %254 = vmatprep.subr.bf16.mxu0 0
  %255 = vmatpush1.bf16.msra.mxu0 0
  %256 = vmatprep.subr.bf16.mxu0 0
  %257 = vmatpush1.bf16.msra.mxu0 0
  %258 = vmatprep.subr.bf16.mxu0 0
  %259 = vmatpush1.bf16.msra.mxu0 0
  %260 = vmatprep.subr.bf16.mxu0 0
  %261 = vmatpush1.bf16.msra.mxu0 0
  %262 = vmatprep.subr.bf16.mxu0 0
  %263 = vmatpush1.bf16.msra.mxu0 0
  %264 = vmatprep.subr.bf16.mxu0 0
  %265 = vmatpush1.bf16.msra.mxu0 0
  %266 = vmatprep.subr.bf16.mxu0 0
  %267 = vmatpush1.bf16.msra.mxu0 0
  %268 = vmatprep.mubr.bf16.mxu0 0
  %269 = vmatmul.mubr.bf16.gmra.mrb[0].mxu0 %v234
  %v270 = vpop.f32.mrb[0].mxu0
  %v271 = vadd.f32 %v219, %v270
  %v272 = vpop.f32.mrb[0].mxu0
  %v273 = vpop.f32.mrb[0].mxu0
  %v274 = vadd.f32 %v219, %v273
  %v275 = vpop.f32.mrb[0].mxu0
  %276 = vdwg.mxu0
  %v277 = vsel %vm161, %v271, 0.0
  %278 = vadd.xlane.f32.xlu0 %v277
  %v279 = vpop.xlane.xlu0 %278
  %v280 = vsel %vm161, %v274, 0.0
  %281 = vadd.xlane.f32.xlu0 %v280
  %v282 = vpop.xlane.xlu0 %281
  %v283 = vmul.f32 %v279, %v168
  %v284 = vmul.f32 %v282, %v168
  %v285 = vsub.f32 %v271, %v283
  %v286 = vsub.f32 %v274, %v284
  %v287 = vmul.f32 %v285, %v285
  %v288 = vmul.f32 %v286, %v286
  %v289 = vsel %vm161, %v287, 0.0
  %290 = vadd.xlane.f32.xlu0 %v289
  %v291 = vpop.xlane.xlu0 %290
  %v292 = vsel %vm161, %v288, 0.0
  %293 = vadd.xlane.f32.xlu0 %v292
  %v294 = vpop.xlane.xlu0 %293
  %v295 = vmul.f32 %v291, %v168
  %v296 = vmul.f32 %v294, %v168
  %v297 = vadd.f32 %v295, 1e-05
  %v298 = vadd.f32 %v296, 1e-05
  %v299 = vrsqrt.pop %v297
  %v300 = vrsqrt.pop %v298
  %v301 = vmul.f32 %v285, %v299
  %v302 = vmul.f32 %v286, %v300
  %v304 = vlaneseq
  %v305 = vshrl.u32 %v304, 7
  %v306 = vsub.s32 0, %v305
  %v307 = vrot.slane %v212, %v306
  %v309 = vmul.f32 %v301, %v307
  %v310 = vmul.f32 %v302, %v307
  %v312 = vlaneseq
  %v313 = vshrl.u32 %v312, 7
  %v314 = vsub.s32 0, %v313
  %v315 = vrot.slane %v213, %v314
  %v317 = vadd.f32 %v309, %v315
  %v318 = vadd.f32 %v310, %v315
  %v319 = vmax.f32 %v317, 0.0
  %v320 = vmax.f32 %v318, 0.0
  %v321 = vld [vmem:[%s9] sm:$0xff]
  %v322 = vld [vmem:[#allocation2] sm:$0x1]
  %v324 = vsel %vm161, %v321, 0
  %v327 = vsel %vm161, %v319, 0
  %v330 = vsel %vm161, %v320, 0
  %332 = vmatprep.subr.mxu0 0.0
  %333 = vmatpush1.xpose.msra.mxu0 %v327
  %334 = vmatprep.subr.mxu0 0.0
  %335 = vmatpush1.xpose.msra.mxu0 %v330
  %336 = vmatprep.subr.mxu0 0.0
  %337 = vmatpush1.xpose.msra.mxu0 0.0
  %338 = vmatprep.subr.mxu0 0.0
  %339 = vmatpush1.xpose.msra.mxu0 0.0
  %340 = vmatprep.subr.mxu0 0.0
  %341 = vmatpush1.xpose.msra.mxu0 0.0
  %342 = vmatprep.subr.mxu0 0.0
  %343 = vmatpush1.xpose.msra.mxu0 0.0
  %344 = vmatprep.subr.mxu0 0.0
  %345 = vmatpush1.xpose.msra.mxu0 0.0
  %346 = vmatprep.subr.mxu0 0.0
  %347 = vmatpush1.xpose.msra.mxu0 0.0
  %348 = vmatprep.subr.mxu0 0.0
  %349 = vmatpush1.xpose.msra.mxu0 0.0
  %350 = vmatprep.subr.mxu0 0.0
  %351 = vmatpush1.xpose.msra.mxu0 0.0
  %352 = vmatprep.subr.mxu0 0.0
  %353 = vmatpush1.xpose.msra.mxu0 0.0
  %354 = vmatprep.subr.mxu0 0.0
  %355 = vmatpush1.xpose.msra.mxu0 0.0
  %356 = vmatprep.subr.mxu0 0.0
  %357 = vmatpush1.xpose.msra.mxu0 0.0
  %358 = vmatprep.subr.mxu0 0.0
  %359 = vmatpush1.xpose.msra.mxu0 0.0
  %360 = vmatprep.subr.mxu0 0.0
  %361 = vmatpush1.xpose.msra.mxu0 0.0
  %362 = vmatprep.subr.mxu0 0.0
  %363 = vmatpush1.xpose.msra.mxu0 0.0
  %364 = vmatprep.subr.mxu0 0.0
  %365 = vmatpush1.xpose.msra.mxu0 0.0
  %366 = vmatprep.subr.mxu0 0.0
  %367 = vmatpush1.xpose.msra.mxu0 0.0
  %368 = vmatprep.subr.mxu0 0.0
  %369 = vmatpush1.xpose.msra.mxu0 0.0
  %370 = vmatprep.subr.mxu0 0.0
  %371 = vmatpush1.xpose.msra.mxu0 0.0
  %372 = vmatprep.subr.mxu0 0.0
  %373 = vmatpush1.xpose.msra.mxu0 0.0
  %374 = vmatprep.subr.mxu0 0.0
  %375 = vmatpush1.xpose.msra.mxu0 0.0
  %376 = vmatprep.subr.mxu0 0.0
  %377 = vmatpush1.xpose.msra.mxu0 0.0
  %378 = vmatprep.subr.mxu0 0.0
  %379 = vmatpush1.xpose.msra.mxu0 0.0
  %380 = vmatprep.subr.mxu0 0.0
  %381 = vmatpush1.xpose.msra.mxu0 0.0
  %382 = vmatprep.subr.mxu0 0.0
  %383 = vmatpush1.xpose.msra.mxu0 0.0
  %384 = vmatprep.subr.mxu0 0.0
  %385 = vmatpush1.xpose.msra.mxu0 0.0
  %386 = vmatprep.subr.mxu0 0.0
  %387 = vmatpush1.xpose.msra.mxu0 0.0
  %388 = vmatprep.subr.mxu0 0.0
  %389 = vmatpush1.xpose.msra.mxu0 0.0
  %390 = vmatprep.subr.mxu0 0.0
  %391 = vmatpush1.xpose.msra.mxu0 0.0
  %392 = vmatprep.subr.mxu0 0.0
  %393 = vmatpush1.xpose.msra.mxu0 0.0
  %394 = vmatprep.subr.mxu0 0.0
  %395 = vmatpush1.xpose.msra.mxu0 0.0
  %396 = vmatprep.mubr.f32.mxu0 0.0
  %397 = vmatmul.mubr.f32.gmra.mrb[0].mxu0 %v324
  %v398 = vpop.f32.mrb[0].mxu0
  %v399 = vadd.f32 0.0, %v398
  %v400 = vpop.f32.mrb[0].mxu0
  %401 = vdwg.mxu0
  %403 = vset.pattern.permute.xlu0 0
  %404 = vperm.xlu0 %403, %v322
  %v405 = vpop.permute.xlu0 %404
  %v407 = vlaneseq
  %v408 = vshrl.u32 %v407, 7
  %v409 = vsub.s32 0, %v408
  %v410 = vrot.slane %v405, %v409
  %v411 = vadd.f32 %v399, %v410
  %v412 = vxor.u32 %v411, 2147483648
  %v413 = vmul.f32 %v412, 1.442695
  %v414 = vpow.pop %v413
  %v415 = vadd.f32 %v414, 1.0
  %v416 = vrcp.pop %v415
  %v417 = vmul.f32 1.0, %v416
  %vm418 = vcmask 122880
  %419 = vst.msk [vmem:[%s11] sm:$0x1] %vm418, %v417
  // Predicated region
  $region46: #{pin_forward.1} parent=0 // pred_check
    _
  $region47: #{pin_forward.1} parent=0 // pred_check_branch
    %421 = sbr.rel (0) target = $region49
  $region48: #{pin_forward.1} parent=0 // pred_region
    _
  $region49: #{pin_forward.1} parent=0 // pred_fallthru
    _
  // Predicated region
  $region50: #{pin_forward.1} parent=0 // pred_check
    _
  $region51: #{pin_forward.1} parent=0 // pred_check_branch
    %423 = sbr.rel (0) target = $region53
  $region52: #{pin_forward.1} parent=0 // pred_region
    _
  $region53: #{pin_forward.1} parent=0 // pred_fallthru
    _

</llo_original>
